<compile_context>
chip_gen: v6e
topology: v6e:2x2x1
jax: 0.10.0
libtpu: 0.0.40
codegen_flags: <defaults>
</compile_context>

<pallas_src>
import jax
import jax.numpy as jnp
from jax.experimental import pallas as pl
from jax.experimental.pallas import tpu as pltpu

_MIB = 1 << 20
_VMEM_TARGET_BYTES = 40 * _MIB   # per-step footprint target (fits v7x 64 MiB)
_VMEM_LIMIT_CAP = 64 * _MIB      # never request more than v7x physical VMEM


def _round_up(x: int, m: int) -> int:
    return (x + m - 1) // m * m


def bobnet_kernel(x_ref, w1_ref, b1_ref, w2_ref, b2_ref, o_ref):
    # Operand cast happens on the VMEM tile (no wrapper-side cast/HBM pass);
    # it is a no-op on the pure-f32 path.
    x = x_ref[...].astype(w1_ref.dtype)
    # Layer 1: MXU matmul with f32 accumulation, f32 bias add + ReLU on VPU.
    h = jnp.dot(x, w1_ref[...], preferred_element_type=jnp.float32)
    h = jnp.maximum(h + b1_ref[...], 0.0)
    # Layer 2: hidden cast to the weight dtype (bf16 in mixed precision),
    # accumulation stays f32.
    out = jnp.dot(h.astype(w2_ref.dtype), w2_ref[...],
                  preferred_element_type=jnp.float32)
    o_ref[...] = (out + b2_ref[...]).astype(o_ref.dtype)


def _resident_spec(shape):
    """Constant-index-map BlockSpec: VMEM-resident across all batch tiles,
    single-buffered (Buffered(1)) since the block never changes."""
    idx = lambda i: (0,) * len(shape)
    try:
        return pl.BlockSpec(shape, idx, pipeline_mode=pl.Buffered(1))
    except Exception:  # older jax without pipeline_mode / Buffered
        return pl.BlockSpec(shape, idx)


def bobnet_forward(x, w1, b1, w2, b2, *, block_batch=1024, compute_dtype=None):
    """Forward pass of BobNet (Linear -> ReLU -> Linear).

    x : (B, n_in) ; w1 : (n_in, n_hidden) ; b1 : (1, n_hidden) or (n_hidden,)
    w2 : (n_hidden, n_out) ; b2 : (1, n_out) or (n_out,)   ->   (B, n_out)

    compute_dtype: optional MXU operand dtype (e.g. jnp.bfloat16 on v6e/v7x).
    The cast of x happens in-kernel on the VMEM tile; weights are cast once in
    the wrapper (batch-independent).  Biases, accumulation, ReLU and the
    returned output stay float32.
    """
    B, n_in = x.shape
    n_hidden = w1.shape[1]
    n_out = w2.shape[1]
    out_dtype = x.dtype

    b1 = jnp.asarray(b1, jnp.float32).reshape(1, n_hidden)
    b2 = jnp.asarray(b2, jnp.float32).reshape(1, n_out)

    w_dtype = jnp.dtype(compute_dtype) if compute_dtype is not None else jnp.dtype(w1.dtype)
    w1 = w1.astype(w_dtype)   # tiny, batch-independent: cast once in wrapper
    w2 = w2.astype(w_dtype)

    x_item = jnp.dtype(x.dtype).itemsize
    o_item = jnp.dtype(out_dtype).itemsize
    w_item = jnp.dtype(w_dtype).itemsize

    # --- batch tile size ----------------------------------------------------
    # bf16 packs 16 rows per sublane group; f32 packs 8.
    row_align = 16 if w_item == 2 else 8
    if B <= row_align:
        tb = B                      # block dim == full array dim (always legal)
    else:
        tb = min(block_batch, _round_up(B, row_align))
        # Guarantee >=2 batch tiles so a 2-TensorCore chip (v7x) can split the
        # "parallel" grid axis across cores.
        tb = min(tb, _round_up((B + 1) // 2, row_align))

    def vmem_bytes(t):
        return (2 * t * n_in * x_item                      # x tile (double buf)
                + 2 * t * n_out * o_item                   # out tile (double buf)
                + (n_in * n_hidden + n_hidden * n_out) * w_item  # resident weights
                + (n_hidden + n_out) * 4                   # resident f32 biases
                + t * n_hidden * 4                         # f32 hidden
                + t * n_hidden * w_item                    # hidden cast for matmul 2
                + t * n_out * 4)                           # f32 pre-store accumulator

    # Shrink the batch tile until the per-step footprint fits the VMEM target.
    while tb > row_align and vmem_bytes(tb) > _VMEM_TARGET_BYTES:
        tb = max(row_align, _round_up(tb // 2, row_align))

    grid = (pl.cdiv(B, tb),)
    vmem_limit = int(min(max(2 * vmem_bytes(tb), 32 * _MIB), _VMEM_LIMIT_CAP))

    cost = pl.CostEstimate(
        flops=2 * B * (n_in * n_hidden + n_hidden * n_out),
        transcendentals=0,
        bytes_accessed=(x.size * x_item
                        + w1.size * w_item + w2.size * w_item
                        + b1.size * 4 + b2.size * 4
                        + B * n_out * o_item),
    )

    return pl.pallas_call(
        bobnet_kernel,
        out_shape=jax.ShapeDtypeStruct((B, n_out), out_dtype),
        grid=grid,
        in_specs=[
            # activations: tiled over the batch grid axis, unpadded lane dim
            pl.BlockSpec((tb, n_in), lambda i: (i, 0)),
            # weights / biases: VMEM-resident, single-buffered
            _resident_spec((n_in, n_hidden)),
            _resident_spec((1, n_hidden)),
            _resident_spec((n_hidden, n_out)),
            _resident_spec((1, n_out)),
        ],
        out_specs=pl.BlockSpec((tb, n_out), lambda i: (i, 0)),
        compiler_params=pltpu.CompilerParams(
            dimension_semantics=("parallel",),
            vmem_limit_bytes=vmem_limit),
        cost_estimate=cost,
    )(x, w1, b1, w2, b2)


def init_params(key, n_in, n_hidden, n_out, dtype=jnp.float32):
    """Deterministic init mirroring nn.Linear (weights stored transposed)."""
    k1, k2, k3, k4 = jax.random.split(key, 4)
    s1 = 1.0 / jnp.sqrt(n_in)
    s2 = 1.0 / jnp.sqrt(n_hidden)
    w1 = jax.random.uniform(k1, (n_in, n_hidden), dtype, -s1, s1)
    b1 = jax.random.uniform(k2, (1, n_hidden), dtype, -s1, s1)
    w2 = jax.random.uniform(k3, (n_hidden, n_out), dtype, -s2, s2)
    b2 = jax.random.uniform(k4, (1, n_out), dtype, -s2, s2)
    return w1, b1, w2, b2


if __name__ == "__main__":
    key = jax.random.PRNGKey(0)
    kx, kp = jax.random.split(key)

    batch, n_in, n_hidden, n_out = 8, 64, 32, 16
    x = jax.random.normal(kx, (batch, n_in), jnp.float32)
    w1, b1, w2, b2 = init_params(kp, n_in, n_hidden, n_out)

    # Reference (same math as the PyTorch forward), plain JAX/f32.
    ref = jnp.maximum(x @ w1 + b1, 0.0) @ w2 + b2

    # 1) f32 path - exact-ish check.
    out = jax.block_until_ready(bobnet_forward(x, w1, b1, w2, b2))
    assert out.shape == (batch, n_out)
    assert jnp.allclose(out, ref, atol=1e-5, rtol=1e-5)

    # 2) bf16 operand path (v6e/v7x MXU-friendly) - mixed-precision tolerance.
    out_bf16 = jax.block_until_ready(
        bobnet_forward(x, w1, b1, w2, b2, compute_dtype=jnp.bfloat16))
    assert out_bf16.shape == (batch, n_out)
    assert jnp.allclose(out_bf16, ref, atol=5e-2, rtol=5e-2)

    # 3) Multi-tile, megacore-splittable grid with an ODD batch: exercises the
    #    partial last tile (no wrapper-side padding of x or the output).
    big_batch = 1000
    xb = jax.random.normal(kx, (big_batch, n_in), jnp.float32)
    refb = jnp.maximum(xb @ w1 + b1, 0.0) @ w2 + b2
    outb = jax.block_until_ready(
        bobnet_forward(xb, w1, b1, w2, b2, block_batch=256))
    assert outb.shape == (big_batch, n_out)
    assert jnp.allclose(outb, refb, atol=1e-5, rtol=1e-5)

    print("KERNEL_OK")
</pallas_src>

<mosaic_0001>
module attributes {stable_mosaic.version = 11 : i64} {
  func.func @bobnet_kernel(%arg0: i32, %arg1: memref<8x64xf32, #tpu.memory_space<vmem>>, %arg2: memref<64x32xf32, #tpu.memory_space<vmem>>, %arg3: memref<1x32xf32, #tpu.memory_space<vmem>>, %arg4: memref<32x16xf32, #tpu.memory_space<vmem>>, %arg5: memref<1x16xf32, #tpu.memory_space<vmem>>, %arg6: memref<8x16xf32, #tpu.memory_space<vmem>>) attributes {dimension_semantics = [#tpu.dimension_semantics<parallel>], iteration_bounds = array<i64: 1>, scalar_prefetch = 0 : i64, scratch_operands = 0 : i64, tpu.core_type = #tpu.core_type<tc>, window_params = [{transform_indices = @transform_0, window_bounds = array<i64: 8, 64>}, {pipeline_mode = #tpu.pipeline_mode<synchronous>, transform_indices = @transform_1, window_bounds = array<i64: 64, 32>}, {pipeline_mode = #tpu.pipeline_mode<synchronous>, transform_indices = @transform_2, window_bounds = array<i64: 1, 32>}, {pipeline_mode = #tpu.pipeline_mode<synchronous>, transform_indices = @transform_3, window_bounds = array<i64: 32, 16>}, {pipeline_mode = #tpu.pipeline_mode<synchronous>, transform_indices = @transform_4, window_bounds = array<i64: 1, 16>}, {transform_indices = @transform_5, window_bounds = array<i64: 8, 16>}]} {
    %c0 = arith.constant 0 : index
    %c0_0 = arith.constant 0 : index
    %0 = vector.load %arg1[%c0, %c0_0] : memref<8x64xf32, #tpu.memory_space<vmem>>, vector<8x64xf32>
    %c0_1 = arith.constant 0 : index
    %c0_2 = arith.constant 0 : index
    %1 = vector.load %arg2[%c0_1, %c0_2] : memref<64x32xf32, #tpu.memory_space<vmem>>, vector<64x32xf32>
    %cst = arith.constant dense<0.000000e+00> : vector<8x32xf32>
    %2 = tpu.matmul %0, %1, %cst {dimension_numbers = #tpu.dot_dimension_numbers<[1], [0], [0], [1], [0, 0, 1, 1], [], []>} : vector<8x64xf32>, vector<64x32xf32>, vector<8x32xf32> -> vector<8x32xf32>
    %c0_3 = arith.constant 0 : index
    %c0_4 = arith.constant 0 : index
    %3 = vector.load %arg3[%c0_3, %c0_4] : memref<1x32xf32, #tpu.memory_space<vmem>>, vector<1x32xf32>
    %4 = vector.broadcast %3 : vector<1x32xf32> to vector<8x32xf32>
    %5 = arith.addf %2, %4 : vector<8x32xf32>
    %cst_5 = arith.constant 0.000000e+00 : f32
    %6 = vector.broadcast %cst_5 : f32 to vector<8x32xf32>
    %7 = arith.maximumf %5, %6 : vector<8x32xf32>
    %c0_6 = arith.constant 0 : index
    %c0_7 = arith.constant 0 : index
    %8 = vector.load %arg4[%c0_6, %c0_7] : memref<32x16xf32, #tpu.memory_space<vmem>>, vector<32x16xf32>
    %cst_8 = arith.constant dense<0.000000e+00> : vector<8x16xf32>
    %9 = tpu.matmul %7, %8, %cst_8 {dimension_numbers = #tpu.dot_dimension_numbers<[1], [0], [0], [1], [0, 0, 1, 1], [], []>} : vector<8x32xf32>, vector<32x16xf32>, vector<8x16xf32> -> vector<8x16xf32>
    %c0_9 = arith.constant 0 : index
    %c0_10 = arith.constant 0 : index
    %10 = vector.load %arg5[%c0_9, %c0_10] : memref<1x16xf32, #tpu.memory_space<vmem>>, vector<1x16xf32>
    %11 = vector.broadcast %10 : vector<1x16xf32> to vector<8x16xf32>
    %12 = arith.addf %9, %11 : vector<8x16xf32>
    %c0_11 = arith.constant 0 : index
    %c0_12 = arith.constant 0 : index
    %13 = vector.load %arg6[%c0_11, %c0_12] : memref<8x16xf32, #tpu.memory_space<vmem>>, vector<8x16xf32>
    tpu.vector_store %arg6[%c0_11, %c0_12], %12 {strides = array<i32>} : memref<8x16xf32, #tpu.memory_space<vmem>>, vector<8x16xf32>,
    return
  }
  func.func @transform_0(%arg0: i32) -> (i32, i32) {
    %c0_i32 = arith.constant 0 : i32
    %c0_i32_0 = arith.constant 0 : i32
    return %arg0, %c0_i32 : i32, i32
  }
  func.func @transform_1(%arg0: i32) -> (i32, i32) {
    %c0_i32 = arith.constant 0 : i32
    %c0_i32_0 = arith.constant 0 : i32
    %c0_i32_1 = arith.constant 0 : i32
    return %c0_i32, %c0_i32_0 : i32, i32
  }
  func.func @transform_2(%arg0: i32) -> (i32, i32) {
    %c0_i32 = arith.constant 0 : i32
    %c0_i32_0 = arith.constant 0 : i32
    %c0_i32_1 = arith.constant 0 : i32
    return %c0_i32, %c0_i32_0 : i32, i32
  }
  func.func @transform_3(%arg0: i32) -> (i32, i32) {
    %c0_i32 = arith.constant 0 : i32
    %c0_i32_0 = arith.constant 0 : i32
    %c0_i32_1 = arith.constant 0 : i32
    return %c0_i32, %c0_i32_0 : i32, i32
  }
  func.func @transform_4(%arg0: i32) -> (i32, i32) {
    %c0_i32 = arith.constant 0 : i32
    %c0_i32_0 = arith.constant 0 : i32
    %c0_i32_1 = arith.constant 0 : i32
    return %c0_i32, %c0_i32_0 : i32, i32
  }
  func.func @transform_5(%arg0: i32) -> (i32, i32) {
    %c0_i32 = arith.constant 0 : i32
    %c0_i32_0 = arith.constant 0 : i32
    return %arg0, %c0_i32 : i32, i32
  }
}

</mosaic_0001>

<llo_original>
// kernel: tpu_custom_call.1
$region0: #{tpu_custom_call.1}
  #allocation0 [shape = 'u32[]', space=smem, size = 0x4, offset = 0x4, fixed_abs, tag = 'smem constant byte address 0x4 - core index']
  #allocation1 [shape = 'u32[144,128]{1,0:T(1,128)}', space=vmem, size = 0x12000, scoped, tag = 'internal scratch']
  %s0 = inlined_call_operand.vmem [shape: f32[8,64], index: 0, kind: input, shape index: {}]
  %s1 = inlined_call_operand.vmem [shape: f32[64,32], index: 1, kind: input, shape index: {}]
  %s2 = inlined_call_operand.vmem [shape: f32[1,32], index: 2, kind: input, shape index: {}]
  %s3 = inlined_call_operand.vmem [shape: f32[32,16], index: 3, kind: input, shape index: {}]
  %s4 = inlined_call_operand.vmem [shape: f32[1,16], index: 4, kind: input, shape index: {}]
  %s5 = inlined_call_operand.hbm [shape: f32[8,16], index: 5, kind: output, shape index: {}]
  %s6 = sld [smem:[#allocation0]]
  $region30: #{tpu_custom_call.1} parent=0
    _
  %s8 = ssub.s32 1, %s6
  %s9 = scalar_select 0, %s8, %s6
  $region1: #{tpu_custom_call.1} parent=0
    #allocation2 [shape = 'u8[4096]{0}', space=vmem, size = 0x1000, scoped, tag = 'output window, operand 0, single buffered']
    #allocation3 [shape = 's32[1]{0}', space=sflag, size = 0x4, scoped, tag = 'scoped memory for tpu_custom_call.1']
    %10 = vsyncpa [#allocation3], 0
    // Predicated region
    $region2: #{tpu_custom_call.1} parent=1 // pred_check
      _
    $region3: #{tpu_custom_call.1} parent=1 // pred_check_branch
      %12 = sbr.rel (0) target = $region5
    $region4: #{tpu_custom_call.1} parent=1 // pred_region
      _
    $region5: #{tpu_custom_call.1} parent=1 // pred_fallthru
      _
    // Predicated region
    $region6: #{tpu_custom_call.1} parent=1 // pred_check
      _
    $region7: #{tpu_custom_call.1} parent=1 // pred_check_branch
      %14 = sbr.rel (0) target = $region9
    $region8: #{tpu_custom_call.1} parent=1 // pred_region
      _
    $region9: #{tpu_custom_call.1} parent=1 // pred_fallthru
      _
    // Predicated region
    $region10: #{tpu_custom_call.1} parent=1 // pred_check
      _
    $region11: #{tpu_custom_call.1} parent=1 // pred_check_branch
      %16 = sbr.rel (0) target = $region13
    $region12: #{tpu_custom_call.1} parent=1 // pred_region
      _
    $region13: #{tpu_custom_call.1} parent=1 // pred_fallthru
      _
    // Predicated region
    $region14: #{tpu_custom_call.1} parent=1 // pred_check
      _
    $region15: #{tpu_custom_call.1} parent=1 // pred_check_branch
      %18 = sbr.rel (0) target = $region17
    $region16: #{tpu_custom_call.1} parent=1 // pred_region
      _
    $region17: #{tpu_custom_call.1} parent=1 // pred_fallthru
      _
    // Predicated region
    $region18: #{tpu_custom_call.1} parent=1 // pred_check
      _
    $region19: #{tpu_custom_call.1} parent=1 // pred_check_branch
      %20 = sbr.rel (0) target = $region21
    $region20: #{tpu_custom_call.1} parent=1 // pred_region
      _
    $region21: #{tpu_custom_call.1} parent=1 // pred_fallthru
      _
    %v21 = vld [vmem:[%s0] sm:$0xff]
    %v22 = vld [vmem:[%s1] sm:$0xff]
    %v23 = vld [vmem:[%s1 + $0x8] sm:$0xff]
    %v24 = vld [vmem:[%s1 + $0x10] sm:$0xff]
    %v25 = vld [vmem:[%s1 + $0x18] sm:$0xff]
    %v26 = vld [vmem:[%s1 + $0x20] sm:$0xff]
    %v27 = vld [vmem:[%s1 + $0x28] sm:$0xff]
    %v28 = vld [vmem:[%s1 + $0x30] sm:$0xff]
    %v29 = vld [vmem:[%s1 + $0x38] sm:$0xff]
    %v30 = vld [vmem:[%s2] sm:$0x1]
    %v32 = vlaneseq
    %v33 = vshrl.u32 %v32, 7
    %v34 = vsub.s32 0, %v33
    %v35 = vrot.slane %v30, %v34
    %vm37 = vcmask 523264
    %v39 = vsel %vm37, %v21, 0
    %41 = vmatprep.subr.mxu0 0.0
    %42 = vmatpush1.msra.mxu0 0.0
    %43 = vmatprep.subr.mxu0 0.0
    %44 = vmatpush1.msra.mxu0 0.0
    %45 = vmatprep.subr.mxu0 0.0
    %46 = vmatpush1.msra.mxu0 0.0
    %47 = vmatprep.subr.mxu0 0.0
    %48 = vmatpush1.msra.mxu0 0.0
    %49 = vmatprep.subr.mxu0 0.0
    %50 = vmatpush1.msra.mxu0 0.0
    %51 = vmatprep.subr.mxu0 0.0
    %52 = vmatpush1.msra.mxu0 0.0
    %53 = vmatprep.subr.mxu0 0.0
    %54 = vmatpush1.msra.mxu0 0.0
    %55 = vmatprep.subr.mxu0 0.0
    %56 = vmatpush1.msra.mxu0 0.0
    %57 = vmatprep.subr.mxu0 0.0
    %58 = vmatpush1.msra.mxu0 %v29
    %59 = vmatprep.subr.mxu0 0.0
    %60 = vmatpush1.msra.mxu0 %v28
    %61 = vmatprep.subr.mxu0 0.0
    %62 = vmatpush1.msra.mxu0 %v27
    %63 = vmatprep.subr.mxu0 0.0
    %64 = vmatpush1.msra.mxu0 %v26
    %65 = vmatprep.subr.mxu0 0.0
    %66 = vmatpush1.msra.mxu0 %v25
    %67 = vmatprep.subr.mxu0 0.0
    %68 = vmatpush1.msra.mxu0 %v24
    %69 = vmatprep.subr.mxu0 0.0
    %70 = vmatpush1.msra.mxu0 %v23
    %71 = vmatprep.subr.mxu0 0.0
    %72 = vmatpush1.msra.mxu0 %v22
    %73 = vmatprep.subr.mxu0 0.0
    %74 = vmatpush2.msra.mxu0 0.0
    %75 = vmatprep.subr.mxu0 0.0
    %76 = vmatpush2.msra.mxu0 0.0
    %77 = vmatprep.subr.mxu0 0.0
    %78 = vmatpush2.msra.mxu0 0.0
    %79 = vmatprep.subr.mxu0 0.0
    %80 = vmatpush2.msra.mxu0 0.0
    %81 = vmatprep.subr.mxu0 0.0
    %82 = vmatpush2.msra.mxu0 0.0
    %83 = vmatprep.subr.mxu0 0.0
    %84 = vmatpush2.msra.mxu0 0.0
    %85 = vmatprep.subr.mxu0 0.0
    %86 = vmatpush2.msra.mxu0 0.0
    %87 = vmatprep.subr.mxu0 0.0
    %88 = vmatpush2.msra.mxu0 0.0
    %89 = vmatprep.subr.mxu0 0.0
    %90 = vmatpush2.msra.mxu0 0.0
    %91 = vmatprep.subr.mxu0 0.0
    %92 = vmatpush2.msra.mxu0 0.0
    %93 = vmatprep.subr.mxu0 0.0
    %94 = vmatpush2.msra.mxu0 0.0
    %95 = vmatprep.subr.mxu0 0.0
    %96 = vmatpush2.msra.mxu0 0.0
    %97 = vmatprep.subr.mxu0 0.0
    %98 = vmatpush2.msra.mxu0 0.0
    %99 = vmatprep.subr.mxu0 0.0
    %100 = vmatpush2.msra.mxu0 0.0
    %101 = vmatprep.subr.mxu0 0.0
    %102 = vmatpush2.msra.mxu0 0.0
    %103 = vmatprep.subr.mxu0 0.0
    %104 = vmatpush2.msra.mxu0 0.0
    %105 = vmatprep.mubr.f32.mxu0 0.0
    %106 = vmatmul.mubr.f32.gmra.mxu0 %v39
    %v107 = vpop.f32.mrf.mxu0
    %v108 = vadd.f32 %v35, %v107
    %v109 = vpop.f32.mrf.mxu0
    %110 = vdwg.mxu0
    %v111 = vmax.f32 %v108, 0.0
    %v112 = vld [vmem:[%s3] sm:$0xff]
    %v113 = vld [vmem:[%s3 + $0x8] sm:$0xff]
    %v114 = vld [vmem:[%s3 + $0x10] sm:$0xff]
    %v115 = vld [vmem:[%s3 + $0x18] sm:$0xff]
    %v116 = vld [vmem:[%s4] sm:$0x1]
    %v118 = vlaneseq
    %v119 = vshrl.u32 %v118, 7
    %v120 = vsub.s32 0, %v119
    %v121 = vrot.slane %v116, %v120
    %vm123 = vcmask 261120
    %v125 = vsel %vm123, %v111, 0
    %127 = vmatprep.subr.mxu0 0.0
    %128 = vmatpush1.msra.mxu0 0.0
    %129 = vmatprep.subr.mxu0 0.0
    %130 = vmatpush1.msra.mxu0 0.0
    %131 = vmatprep.subr.mxu0 0.0
    %132 = vmatpush1.msra.mxu0 0.0
    %133 = vmatprep.subr.mxu0 0.0
    %134 = vmatpush1.msra.mxu0 0.0
    %135 = vmatprep.subr.mxu0 0.0
    %136 = vmatpush1.msra.mxu0 0.0
    %137 = vmatprep.subr.mxu0 0.0
    %138 = vmatpush1.msra.mxu0 0.0
    %139 = vmatprep.subr.mxu0 0.0
    %140 = vmatpush1.msra.mxu0 0.0
    %141 = vmatprep.subr.mxu0 0.0
    %142 = vmatpush1.msra.mxu0 0.0
    %143 = vmatprep.subr.mxu0 0.0
    %144 = vmatpush1.msra.mxu0 0.0
    %145 = vmatprep.subr.mxu0 0.0
    %146 = vmatpush1.msra.mxu0 0.0
    %147 = vmatprep.subr.mxu0 0.0
    %148 = vmatpush1.msra.mxu0 0.0
    %149 = vmatprep.subr.mxu0 0.0
    %150 = vmatpush1.msra.mxu0 0.0
    %151 = vmatprep.subr.mxu0 0.0
    %152 = vmatpush1.msra.mxu0 %v115
    %153 = vmatprep.subr.mxu0 0.0
    %154 = vmatpush1.msra.mxu0 %v114
    %155 = vmatprep.subr.mxu0 0.0
    %156 = vmatpush1.msra.mxu0 %v113
    %157 = vmatprep.subr.mxu0 0.0
    %158 = vmatpush1.msra.mxu0 %v112
    %159 = vmatprep.subr.mxu0 0.0
    %160 = vmatpush2.msra.mxu0 0.0
    %161 = vmatprep.subr.mxu0 0.0
    %162 = vmatpush2.msra.mxu0 0.0
    %163 = vmatprep.subr.mxu0 0.0
    %164 = vmatpush2.msra.mxu0 0.0
    %165 = vmatprep.subr.mxu0 0.0
    %166 = vmatpush2.msra.mxu0 0.0
    %167 = vmatprep.subr.mxu0 0.0
    %168 = vmatpush2.msra.mxu0 0.0
    %169 = vmatprep.subr.mxu0 0.0
    %170 = vmatpush2.msra.mxu0 0.0
    %171 = vmatprep.subr.mxu0 0.0
    %172 = vmatpush2.msra.mxu0 0.0
    %173 = vmatprep.subr.mxu0 0.0
    %174 = vmatpush2.msra.mxu0 0.0
    %175 = vmatprep.subr.mxu0 0.0
    %176 = vmatpush2.msra.mxu0 0.0
    %177 = vmatprep.subr.mxu0 0.0
    %178 = vmatpush2.msra.mxu0 0.0
    %179 = vmatprep.subr.mxu0 0.0
    %180 = vmatpush2.msra.mxu0 0.0
    %181 = vmatprep.subr.mxu0 0.0
    %182 = vmatpush2.msra.mxu0 0.0
    %183 = vmatprep.subr.mxu0 0.0
    %184 = vmatpush2.msra.mxu0 0.0
    %185 = vmatprep.subr.mxu0 0.0
    %186 = vmatpush2.msra.mxu0 0.0
    %187 = vmatprep.subr.mxu0 0.0
    %188 = vmatpush2.msra.mxu0 0.0
    %189 = vmatprep.subr.mxu0 0.0
    %190 = vmatpush2.msra.mxu0 0.0
    %191 = vmatprep.mubr.f32.mxu0 0.0
    %192 = vmatmul.mubr.f32.gmra.mxu0 %v125
    %v193 = vpop.f32.mrf.mxu0
    %v194 = vadd.f32 %v121, %v193
    %v195 = vpop.f32.mrf.mxu0
    %196 = vdwg.mxu0
    %vm197 = vcmask 130048
    %198 = vst.msk [vmem:[#allocation2] sm:$0xff] %vm197, %v194
    // Predicated region
    $region22: #{tpu_custom_call.1} parent=1 // pred_check
      _
    $region23: #{tpu_custom_call.1} parent=1 // pred_check_branch
      %200 = sbr.rel (0) target = $region25
    $region24: #{tpu_custom_call.1} parent=1 // pred_region
      %s202 = ssub.s32 128, 128
      %203 = vsyncadd [#allocation3], %s202
      %s205 = sshll.u32 [#allocation2], 4
      %s206 = int_to_ptr.vmem [resolvable:$true] %s205
      %208 = dma.vmem_to_hbm [thread:$0]  %s206, 128, %s5, [#allocation3]
    $region25: #{tpu_custom_call.1} parent=1 // pred_fallthru
      _
    // Predicated region
    $region26: #{tpu_custom_call.1} parent=1 // pred_check
      _
    $region27: #{tpu_custom_call.1} parent=1 // pred_check_branch
      %210 = sbr.rel (0) target = $region29
    $region28: #{tpu_custom_call.1} parent=1 // pred_region
      %211 = dma.done [#allocation3], 128
    $region29: #{tpu_custom_call.1} parent=1 // pred_fallthru
      _
    %212 = vsyncpa [#allocation3], 1

</llo_original>
